<compile_context>
chip_gen: v6e
topology: v6e:2x2x1
jax: 0.10.0
libtpu: 0.0.40
codegen_flags: <defaults>
</compile_context>

<pallas_src>
import jax
import jax.numpy as jnp
from jax.experimental import pallas as pl
from jax.experimental.pallas import tpu as pltpu


# ----------------------------------------------------------------------------
# Pallas kernel: projection + normalize + similarity + contrastive loss
# ----------------------------------------------------------------------------
def _clip_head_kernel(temp_ref, text_feat_ref, img_feat_ref, wt_ref, wv_ref,
                      text_emb_ref, img_emb_ref, lpt_ref, scalars_ref):
    # Projections: weights arrive pre-transposed as (hidden, proj) bf16, so the
    # MXU consumes them directly (nn.Linear(bias=False): y = x @ W.T).
    t = jnp.dot(text_feat_ref[...], wt_ref[...],
                preferred_element_type=jnp.float32)          # (B, P) f32
    v = jnp.dot(img_feat_ref[...], wv_ref[...],
                preferred_element_type=jnp.float32)          # (B, P) f32

    # F.normalize(x, dim=-1): x / max(||x||, 1e-12) == x * rsqrt(max(x.x, 1e-24))
    t = t * jax.lax.rsqrt(
        jnp.maximum(jnp.sum(t * t, axis=-1, keepdims=True), 1e-24))
    v = v * jax.lax.rsqrt(
        jnp.maximum(jnp.sum(v * v, axis=-1, keepdims=True), 1e-24))

    text_emb_ref[...] = t
    img_emb_ref[...] = v

    # Similarity: bf16 operands, f32 accumulation.  dot_general contracts the
    # last axis of both operands so no transpose of v is ever materialized.
    inv_temp = 1.0 / temp_ref[0]
    lpt = jax.lax.dot_general(
        t.astype(jnp.bfloat16), v.astype(jnp.bfloat16),
        dimension_numbers=(((1,), (1,)), ((), ())),
        preferred_element_type=jnp.float32) * inv_temp       # (B, B) f32
    lpt_ref[...] = lpt

    # Symmetric cross-entropy with arange labels.  logits_per_image = lpt.T, so
    # its CE is a column-wise logsumexp of lpt minus the same diagonal — no
    # second (B,B) transpose or output needed.
    b = lpt.shape[0]
    row = jax.lax.broadcasted_iota(jnp.int32, (b, b), 0)
    col = jax.lax.broadcasted_iota(jnp.int32, (b, b), 1)
    diag_mean = jnp.sum(jnp.where(row == col, lpt, 0.0)) / b

    m_r = jnp.max(lpt, axis=1, keepdims=True)
    lse_r = jnp.log(jnp.sum(jnp.exp(lpt - m_r), axis=1, keepdims=True)) + m_r
    text_loss = jnp.sum(lse_r) / b - diag_mean

    m_c = jnp.max(lpt, axis=0, keepdims=True)
    lse_c = jnp.log(jnp.sum(jnp.exp(lpt - m_c), axis=0, keepdims=True)) + m_c
    image_loss = jnp.sum(lse_c) / b - diag_mean

    loss = 0.5 * (text_loss + image_loss)

    # One lane-dense scalar row: lane 0 = loss, lane 1 = text_loss,
    # lane 2 = image_loss.
    lane = jax.lax.broadcasted_iota(jnp.int32, scalars_ref.shape, 1)
    scalars_ref[...] = jnp.where(
        lane == 0, loss,
        jnp.where(lane == 1, text_loss,
                  jnp.where(lane == 2, image_loss, 0.0)))


def clip_head(text_features, image_features, text_proj_w, visual_proj_w,
              temperature=0.07):
    """Runs the CLIP head in a single-block Pallas kernel.

    Returns (text_embeds, image_embeds, logits_per_text, scalars) where
    scalars is a (1, 128) row: [loss, text_loss, image_loss, 0, ...].
    """
    b = text_features.shape[0]
    proj_dim = text_proj_w.shape[0]

    # Layout/dtype plumbing done once in the wrapper (not inside the kernel):
    # pre-transpose nn.Linear weights to (hidden, proj) and cast MXU operands
    # to bf16 (f32 accumulation inside the kernel).
    wt_t = text_proj_w.T.astype(jnp.bfloat16)       # (Ht, P)
    wv_t = visual_proj_w.T.astype(jnp.bfloat16)     # (Hv, P)
    tf = text_features.astype(jnp.bfloat16)         # (B, Ht)
    vf = image_features.astype(jnp.bfloat16)        # (B, Hv)
    temp = jnp.asarray([temperature], dtype=jnp.float32)

    vmem = pl.BlockSpec(memory_space=pltpu.MemorySpace.VMEM)
    smem = pl.BlockSpec(memory_space=pltpu.MemorySpace.SMEM)

    out_shapes = (
        jax.ShapeDtypeStruct((b, proj_dim), jnp.float32),   # text_embeds
        jax.ShapeDtypeStruct((b, proj_dim), jnp.float32),   # image_embeds
        jax.ShapeDtypeStruct((b, b), jnp.float32),          # logits_per_text
        jax.ShapeDtypeStruct((1, 128), jnp.float32),        # [loss, tl, il, ...]
    )

    outs = pl.pallas_call(
        _clip_head_kernel,
        out_shape=out_shapes,
        in_specs=[smem, vmem, vmem, vmem, vmem],
        out_specs=(vmem, vmem, vmem, vmem),
    )(temp, tf, vf, wt_t, wv_t)
    return outs


# ----------------------------------------------------------------------------
# Synthetic backbones + parameter init (plain JAX glue)
# ----------------------------------------------------------------------------
def init_params(key, vocab_size, text_hidden, vision_hidden, proj_dim,
                channels, patch_size):
    k = jax.random.split(key, 4)
    params = {
        # TODO(synk): pretrained CLIPTextModel / CLIPVisionModel weights are not
        # loadable here; synthetic deterministic encoders stand in for them.
        "token_embedding": 0.02 * jax.random.normal(
            k[0], (vocab_size, text_hidden), jnp.float32),
        "patch_proj": 0.02 * jax.random.normal(
            k[1], (channels * patch_size * patch_size, vision_hidden),
            jnp.float32),
        # nn.init.normal_(w, std=0.02) for the projection heads (as in the
        # module); stored in PyTorch (out_features, in_features) layout.
        "text_projection": 0.02 * jax.random.normal(
            k[2], (proj_dim, text_hidden), jnp.float32),
        "visual_projection": 0.02 * jax.random.normal(
            k[3], (proj_dim, vision_hidden), jnp.float32),
        "patch_size": patch_size,
    }
    return params


def clip_forward(params, input_ids, attention_mask, pixel_values,
                 temperature=0.07):
    # ---- text backbone (synthetic): embedding + masked mean pooling ----
    tok_emb = params["token_embedding"][input_ids]              # (B, S, Ht)
    mask = attention_mask[..., None].astype(jnp.float32)        # (B, S, 1)
    text_features = jnp.sum(tok_emb * mask, axis=1) / jnp.maximum(
        jnp.sum(mask, axis=1), 1.0)                             # (B, Ht)

    # ---- vision backbone (synthetic): patchify + linear + mean pooling ----
    # pixel_values layout is NCHW (PyTorch convention).
    B, C, H, W = pixel_values.shape
    P = params["patch_size"]
    patches = pixel_values.reshape(B, C, H // P, P, W // P, P)
    patches = patches.transpose(0, 2, 4, 1, 3, 5).reshape(
        B, (H // P) * (W // P), C * P * P)                      # (B, N, C*P*P)
    img_tokens = patches @ params["patch_proj"]                 # (B, N, Hv)
    image_features = jnp.mean(img_tokens, axis=1)               # (B, Hv)

    # ---- CLIP head: Pallas kernel ----
    text_embeds, image_embeds, logits_per_text, scalars = clip_head(
        text_features, image_features,
        params["text_projection"], params["visual_projection"],
        temperature=temperature)

    return {
        "text_embeds": text_embeds,
        "image_embeds": image_embeds,
        "logits_per_text": logits_per_text,
        # logits_per_image = image_embeds @ text_embeds.T / T == lpt.T;
        # derived in the wrapper instead of a second in-kernel (B,B) writeback.
        "logits_per_image": logits_per_text.T,
        "loss": scalars[0, 0],
        "text_loss": scalars[0, 1],
        "image_loss": scalars[0, 2],
    }


# ----------------------------------------------------------------------------
# Pure-JAX reference of the head (same bf16 matmul casting) for sanity checks
# ----------------------------------------------------------------------------
def _ref_head(text_features, image_features, text_proj_w, visual_proj_w,
              temperature):
    tf = text_features.astype(jnp.bfloat16)
    vf = image_features.astype(jnp.bfloat16)
    wt = text_proj_w.T.astype(jnp.bfloat16)
    wv = visual_proj_w.T.astype(jnp.bfloat16)
    t = jnp.dot(tf, wt, preferred_element_type=jnp.float32)
    v = jnp.dot(vf, wv, preferred_element_type=jnp.float32)
    t = t * jax.lax.rsqrt(jnp.maximum(jnp.sum(t * t, -1, keepdims=True), 1e-24))
    v = v * jax.lax.rsqrt(jnp.maximum(jnp.sum(v * v, -1, keepdims=True), 1e-24))
    lpt = jnp.dot(t.astype(jnp.bfloat16), v.astype(jnp.bfloat16).T,
                  preferred_element_type=jnp.float32) / temperature
    lpi = lpt.T
    b = lpt.shape[0]
    idx = jnp.arange(b)

    def ce(logits):
        lse = jax.nn.logsumexp(logits, axis=-1)
        return jnp.mean(lse - logits[idx, idx])

    tl = ce(lpt)
    il = ce(lpi)
    return lpt, 0.5 * (tl + il), tl, il


# ----------------------------------------------------------------------------
# Demo
# ----------------------------------------------------------------------------
if __name__ == "__main__":
    key = jax.random.PRNGKey(0)

    # Small shapes consistent with CLIP's forward signature (lane-dense
    # proj_dim / hidden).
    batch = 8
    seq_len = 8
    vocab_size = 100
    text_hidden = 128
    vision_hidden = 128
    proj_dim = 128
    channels = 3
    img_size = 16
    patch_size = 8
    temperature = 0.07

    k_params, k_ids, k_pix = jax.random.split(key, 3)
    params = init_params(k_params, vocab_size, text_hidden, vision_hidden,
                         proj_dim, channels, patch_size)

    input_ids = jax.random.randint(k_ids, (batch, seq_len), 0, vocab_size,
                                   dtype=jnp.int32)
    attention_mask = jnp.ones((batch, seq_len), dtype=jnp.int32)
    pixel_values = jax.random.normal(
        k_pix, (batch, channels, img_size, img_size), jnp.float32)  # NCHW

    outputs = clip_forward(params, input_ids, attention_mask, pixel_values,
                           temperature=temperature)
    jax.block_until_ready(outputs)

    # Sanity checks against a pure-JAX reference of the head.
    mask = attention_mask[..., None].astype(jnp.float32)
    text_features = jnp.sum(
        params["token_embedding"][input_ids] * mask, axis=1) / jnp.maximum(
        jnp.sum(mask, axis=1), 1.0)
    B, C, H, W = pixel_values.shape
    P = patch_size
    patches = pixel_values.reshape(B, C, H // P, P, W // P, P)
    patches = patches.transpose(0, 2, 4, 1, 3, 5).reshape(
        B, (H // P) * (W // P), C * P * P)
    image_features = jnp.mean(patches @ params["patch_proj"], axis=1)

    ref_lpt, ref_loss, ref_tl, ref_il = _ref_head(
        text_features, image_features,
        params["text_projection"], params["visual_projection"], temperature)

    assert outputs["text_embeds"].shape == (batch, proj_dim)
    assert outputs["image_embeds"].shape == (batch, proj_dim)
    assert outputs["logits_per_text"].shape == (batch, batch)
    assert outputs["logits_per_image"].shape == (batch, batch)
    assert bool(jnp.isfinite(outputs["loss"]))
    assert bool(jnp.allclose(outputs["logits_per_text"], ref_lpt,
                             atol=0.25, rtol=0.05))
    assert abs(float(outputs["loss"]) - float(ref_loss)) < 5e-2
    assert abs(float(outputs["text_loss"]) - float(ref_tl)) < 5e-2
    assert abs(float(outputs["image_loss"]) - float(ref_il)) < 5e-2

    print("KERNEL_OK")
</pallas_src>

<mosaic_0001>
module attributes {stable_mosaic.version = 11 : i64} {
  func.func @_clip_head_kernel(%arg0: memref<1xf32, #tpu.memory_space<smem>>, %arg1: memref<8x128xbf16, #tpu.memory_space<vmem>>, %arg2: memref<8x128xbf16, #tpu.memory_space<vmem>>, %arg3: memref<128x128xbf16, #tpu.memory_space<vmem>>, %arg4: memref<128x128xbf16, #tpu.memory_space<vmem>>, %arg5: memref<8x128xf32, #tpu.memory_space<vmem>>, %arg6: memref<8x128xf32, #tpu.memory_space<vmem>>, %arg7: memref<8x8xf32, #tpu.memory_space<vmem>>, %arg8: memref<1x128xf32, #tpu.memory_space<vmem>>) attributes {dimension_semantics = [], scalar_prefetch = 0 : i64, scratch_operands = 0 : i64, tpu.core_type = #tpu.core_type<tc>} {
    %c0 = arith.constant 0 : index
    %c0_0 = arith.constant 0 : index
    %0 = vector.load %arg1[%c0, %c0_0] : memref<8x128xbf16, #tpu.memory_space<vmem>>, vector<8x128xbf16>
    %c0_1 = arith.constant 0 : index
    %c0_2 = arith.constant 0 : index
    %1 = vector.load %arg3[%c0_1, %c0_2] : memref<128x128xbf16, #tpu.memory_space<vmem>>, vector<128x128xbf16>
    %cst = arith.constant dense<0.000000e+00> : vector<8x128xf32>
    %2 = tpu.matmul %0, %1, %cst {dimension_numbers = #tpu.dot_dimension_numbers<[1], [0], [0], [1], [0, 0, 1, 1], [], []>} : vector<8x128xbf16>, vector<128x128xbf16>, vector<8x128xf32> -> vector<8x128xf32>
    %c0_3 = arith.constant 0 : index
    %c0_4 = arith.constant 0 : index
    %3 = vector.load %arg2[%c0_3, %c0_4] : memref<8x128xbf16, #tpu.memory_space<vmem>>, vector<8x128xbf16>
    %c0_5 = arith.constant 0 : index
    %c0_6 = arith.constant 0 : index
    %4 = vector.load %arg4[%c0_5, %c0_6] : memref<128x128xbf16, #tpu.memory_space<vmem>>, vector<128x128xbf16>
    %cst_7 = arith.constant dense<0.000000e+00> : vector<8x128xf32>
    %5 = tpu.matmul %3, %4, %cst_7 {dimension_numbers = #tpu.dot_dimension_numbers<[1], [0], [0], [1], [0, 0, 1, 1], [], []>} : vector<8x128xbf16>, vector<128x128xbf16>, vector<8x128xf32> -> vector<8x128xf32>
    %6 = arith.mulf %2, %2 : vector<8x128xf32>
    %cst_8 = arith.constant dense<0.000000e+00> : vector<8xf32>
    %7 = vector.multi_reduction <add>, %6, %cst_8 [1] : vector<8x128xf32> to vector<8xf32>
    %8 = vector.shape_cast %7 : vector<8xf32> to vector<8x1xf32>
    %cst_9 = arith.constant 1.000000e-24 : f32
    %9 = vector.broadcast %cst_9 : f32 to vector<8x1xf32>
    %10 = arith.maximumf %8, %9 : vector<8x1xf32>
    %11 = math.rsqrt %10 : vector<8x1xf32>
    %12 = vector.broadcast %11 : vector<8x1xf32> to vector<8x128xf32>
    %13 = arith.mulf %2, %12 : vector<8x128xf32>
    %14 = arith.mulf %5, %5 : vector<8x128xf32>
    %cst_10 = arith.constant dense<0.000000e+00> : vector<8xf32>
    %15 = vector.multi_reduction <add>, %14, %cst_10 [1] : vector<8x128xf32> to vector<8xf32>
    %16 = vector.shape_cast %15 : vector<8xf32> to vector<8x1xf32>
    %cst_11 = arith.constant 1.000000e-24 : f32
    %17 = vector.broadcast %cst_11 : f32 to vector<8x1xf32>
    %18 = arith.maximumf %16, %17 : vector<8x1xf32>
    %19 = math.rsqrt %18 : vector<8x1xf32>
    %20 = vector.broadcast %19 : vector<8x1xf32> to vector<8x128xf32>
    %21 = arith.mulf %5, %20 : vector<8x128xf32>
    %c0_12 = arith.constant 0 : index
    %c0_13 = arith.constant 0 : index
    %22 = vector.load %arg5[%c0_12, %c0_13] : memref<8x128xf32, #tpu.memory_space<vmem>>, vector<8x128xf32>
    tpu.vector_store %arg5[%c0_12, %c0_13], %13 {strides = array<i32>} : memref<8x128xf32, #tpu.memory_space<vmem>>, vector<8x128xf32>,
    %c0_14 = arith.constant 0 : index
    %c0_15 = arith.constant 0 : index
    %23 = vector.load %arg6[%c0_14, %c0_15] : memref<8x128xf32, #tpu.memory_space<vmem>>, vector<8x128xf32>
    tpu.vector_store %arg6[%c0_14, %c0_15], %21 {strides = array<i32>} : memref<8x128xf32, #tpu.memory_space<vmem>>, vector<8x128xf32>,
    %c0_16 = arith.constant 0 : index
    %24 = memref.load %arg0[%c0_16] : memref<1xf32, #tpu.memory_space<smem>>
    %cst_17 = arith.constant 1.000000e+00 : f32
    %25 = arith.divf %cst_17, %24 : f32
    %26 = arith.truncf %13 : vector<8x128xf32> to vector<8x128xbf16>
    %27 = arith.truncf %21 : vector<8x128xf32> to vector<8x128xbf16>
    %cst_18 = arith.constant dense<0.000000e+00> : vector<8x8xf32>
    %28 = tpu.matmul %26, %27, %cst_18 {dimension_numbers = #tpu.dot_dimension_numbers<[1], [1], [0], [0], [0, 0, 1, 0], [], []>} : vector<8x128xbf16>, vector<8x128xbf16>, vector<8x8xf32> -> vector<8x8xf32>
    %29 = vector.broadcast %25 : f32 to vector<8x8xf32>
    %30 = arith.mulf %28, %29 : vector<8x8xf32>
    %c0_19 = arith.constant 0 : index
    %c0_20 = arith.constant 0 : index
    %31 = vector.load %arg7[%c0_19, %c0_20] : memref<8x8xf32, #tpu.memory_space<vmem>>, vector<8x8xf32>
    tpu.vector_store %arg7[%c0_19, %c0_20], %30 {strides = array<i32>} : memref<8x8xf32, #tpu.memory_space<vmem>>, vector<8x8xf32>,
    %32 = tpu.iota {dimensions = array<i32: 0>} : vector<8x8xi32>
    %33 = tpu.iota {dimensions = array<i32: 1>} : vector<8x8xi32>
    %34 = arith.cmpi eq, %32, %33 : vector<8x8xi32>
    %cst_21 = arith.constant 0.000000e+00 : f32
    %35 = vector.broadcast %cst_21 : f32 to vector<8x8xf32>
    %36 = arith.select %34, %30, %35 : vector<8x8xi1>, vector<8x8xf32>
    %37 = vector.shape_cast %36 : vector<8x8xf32> to vector<1x8x8xf32>
    %cst_22 = arith.constant dense<0.000000e+00> : vector<1xf32>
    %38 = vector.multi_reduction <add>, %37, %cst_22 [1, 2] : vector<1x8x8xf32> to vector<1xf32>
    %39 = vector.shape_cast %38 : vector<1xf32> to vector<1x1x1xf32>
    %40 = vector.extract %39[0, 0, 0] : f32 from vector<1x1x1xf32>
    %cst_23 = arith.constant 8.000000e+00 : f32
    %41 = arith.divf %40, %cst_23 : f32
    %cst_24 = arith.constant dense<0xFF800000> : vector<8xf32>
    %42 = vector.multi_reduction <maximumf>, %30, %cst_24 [1] : vector<8x8xf32> to vector<8xf32>
    %43 = vector.shape_cast %42 : vector<8xf32> to vector<8x1xf32>
    %44 = vector.broadcast %43 : vector<8x1xf32> to vector<8x8xf32>
    %45 = arith.subf %30, %44 : vector<8x8xf32>
    %46 = math.exp %45 : vector<8x8xf32>
    %cst_25 = arith.constant dense<0.000000e+00> : vector<8xf32>
    %47 = vector.multi_reduction <add>, %46, %cst_25 [1] : vector<8x8xf32> to vector<8xf32>
    %48 = vector.shape_cast %47 : vector<8xf32> to vector<8x1xf32>
    %49 = math.log %48 : vector<8x1xf32>
    %50 = arith.addf %49, %43 : vector<8x1xf32>
    %51 = vector.shape_cast %50 : vector<8x1xf32> to vector<1x8x1xf32>
    %cst_26 = arith.constant dense<0.000000e+00> : vector<1xf32>
    %52 = vector.multi_reduction <add>, %51, %cst_26 [1, 2] : vector<1x8x1xf32> to vector<1xf32>
    %53 = vector.shape_cast %52 : vector<1xf32> to vector<1x1x1xf32>
    %54 = vector.extract %53[0, 0, 0] : f32 from vector<1x1x1xf32>
    %cst_27 = arith.constant 8.000000e+00 : f32
    %55 = arith.divf %54, %cst_27 : f32
    %56 = arith.subf %55, %41 : f32
    %cst_28 = arith.constant dense<0xFF800000> : vector<8xf32>
    %57 = vector.multi_reduction <maximumf>, %30, %cst_28 [0] : vector<8x8xf32> to vector<8xf32>
    %58 = vector.shape_cast %57 : vector<8xf32> to vector<1x8xf32>
    %59 = vector.broadcast %58 : vector<1x8xf32> to vector<8x8xf32>
    %60 = arith.subf %30, %59 : vector<8x8xf32>
    %61 = math.exp %60 : vector<8x8xf32>
    %cst_29 = arith.constant dense<0.000000e+00> : vector<8xf32>
    %62 = vector.multi_reduction <add>, %61, %cst_29 [0] : vector<8x8xf32> to vector<8xf32>
    %63 = vector.shape_cast %62 : vector<8xf32> to vector<1x8xf32>
    %64 = math.log %63 : vector<1x8xf32>
    %65 = arith.addf %64, %58 : vector<1x8xf32>
    %66 = vector.shape_cast %65 : vector<1x8xf32> to vector<1x1x8xf32>
    %cst_30 = arith.constant dense<0.000000e+00> : vector<1xf32>
    %67 = vector.multi_reduction <add>, %66, %cst_30 [1, 2] : vector<1x1x8xf32> to vector<1xf32>
    %68 = vector.shape_cast %67 : vector<1xf32> to vector<1x1x1xf32>
    %69 = vector.extract %68[0, 0, 0] : f32 from vector<1x1x1xf32>
    %cst_31 = arith.constant 8.000000e+00 : f32
    %70 = arith.divf %69, %cst_31 : f32
    %71 = arith.subf %70, %41 : f32
    %72 = arith.addf %56, %71 : f32
    %cst_32 = arith.constant 5.000000e-01 : f32
    %73 = arith.mulf %cst_32, %72 : f32
    %74 = tpu.iota {dimensions = array<i32: 1>} : vector<1x128xi32>
    %c0_i32 = arith.constant 0 : i32
    %75 = vector.broadcast %c0_i32 : i32 to vector<1x128xi32>
    %76 = arith.cmpi eq, %74, %75 : vector<1x128xi32>
    %c1_i32 = arith.constant 1 : i32
    %77 = vector.broadcast %c1_i32 : i32 to vector<1x128xi32>
    %78 = arith.cmpi eq, %74, %77 : vector<1x128xi32>
    %c2_i32 = arith.constant 2 : i32
    %79 = vector.broadcast %c2_i32 : i32 to vector<1x128xi32>
    %80 = arith.cmpi eq, %74, %79 : vector<1x128xi32>
    %cst_33 = arith.constant 0.000000e+00 : f32
    %81 = vector.broadcast %71 : f32 to vector<1x128xf32>
    %82 = vector.broadcast %cst_33 : f32 to vector<1x128xf32>
    %83 = arith.select %80, %81, %82 : vector<1x128xi1>, vector<1x128xf32>
    %84 = vector.broadcast %56 : f32 to vector<1x128xf32>
    %85 = arith.select %78, %84, %83 : vector<1x128xi1>, vector<1x128xf32>
    %86 = vector.broadcast %73 : f32 to vector<1x128xf32>
    %87 = arith.select %76, %86, %85 : vector<1x128xi1>, vector<1x128xf32>
    %c0_34 = arith.constant 0 : index
    %c0_35 = arith.constant 0 : index
    %88 = vector.load %arg8[%c0_34, %c0_35] : memref<1x128xf32, #tpu.memory_space<vmem>>, vector<1x128xf32>
    tpu.vector_store %arg8[%c0_34, %c0_35], %87 {strides = array<i32>} : memref<1x128xf32, #tpu.memory_space<vmem>>, vector<1x128xf32>,
    return
  }
}

</mosaic_0001>

<llo_original>
// kernel: tpu_custom_call.1
$region0: #{tpu_custom_call.1}
  #allocation0 [shape = 'u32[]', space=smem, size = 0x4, offset = 0x4, fixed_abs, tag = 'smem constant byte address 0x4 - core index']
  #allocation1 [shape = 'u32[144,128]{1,0:T(1,128)}', space=vmem, size = 0x12000, scoped, tag = 'internal scratch']
  #allocation2 [shape = 'f32[1]{0:T(128)S(6)}', space=smem, size = 0x200, scoped, tag = 'scoped memory for tpu_custom_call.1']
  %s0 = inlined_call_operand.<no memory space> [shape: f32[1], index: 0, kind: input, shape index: {}]
  %s1 = inlined_call_operand.hbm [shape: bf16[8,128], index: 1, kind: input, shape index: {}]
  %s2 = inlined_call_operand.hbm [shape: bf16[8,128], index: 2, kind: input, shape index: {}]
  %s3 = inlined_call_operand.hbm [shape: bf16[128,128], index: 3, kind: input, shape index: {}]
  %s4 = inlined_call_operand.hbm [shape: bf16[128,128], index: 4, kind: input, shape index: {}]
  %s5 = inlined_call_operand.hbm [shape: f32[8,128], index: 5, kind: output, shape index: {0}]
  %s6 = inlined_call_operand.hbm [shape: f32[8,128], index: 6, kind: output, shape index: {1}]
  %s7 = inlined_call_operand.hbm [shape: f32[8,8], index: 7, kind: output, shape index: {2}]
  %s8 = inlined_call_operand.hbm [shape: f32[1,128], index: 8, kind: output, shape index: {3}]
  %9 = xla_tuple %s5, %s6, %s7, %s8
  %s10 = sld [smem:[#allocation0]]
  $region70: #{tpu_custom_call.1} parent=0
    _
  %s12 = ssub.s32 1, %s10
  %s13 = scalar_select 0, %s12, %s10
  %14 = sst [smem:[#allocation2]] %s0
  $region1: #{tpu_custom_call.1} parent=0
    #allocation3 [shape = 'u8[2048]{0}', space=vmem, size = 0x800, scoped, tag = 'input window, operand 1, single buffered']
    #allocation4 [shape = 's32[1]{0}', space=sflag, size = 0x4, scoped, tag = 'scoped memory for tpu_custom_call.1']
    #allocation5 [shape = 's32[1]{0}', space=sflag, size = 0x4, scoped, tag = 'scoped memory for tpu_custom_call.1']
    #allocation6 [shape = 'u8[2048]{0}', space=vmem, size = 0x800, scoped, tag = 'input window, operand 2, single buffered']
    #allocation7 [shape = 's32[1]{0}', space=sflag, size = 0x4, scoped, tag = 'scoped memory for tpu_custom_call.1']
    #allocation8 [shape = 'u8[32768]{0}', space=vmem, size = 0x8000, scoped, tag = 'input window, operand 3, single buffered']
    #allocation9 [shape = 'u8[32768]{0}', space=vmem, size = 0x8000, scoped, tag = 'input window, operand 4, single buffered']
    #allocation10 [shape = 's32[1]{0}', space=sflag, size = 0x4, scoped, tag = 'scoped memory for tpu_custom_call.1']
    #allocation11 [shape = 'u8[4096]{0}', space=vmem, size = 0x1000, scoped, tag = 'output window, operand 0, single buffered']
    #allocation12 [shape = 'u8[4096]{0}', space=vmem, size = 0x1000, scoped, tag = 'output window, operand 1, single buffered']
    #allocation13 [shape = 's32[1]{0}', space=sflag, size = 0x4, scoped, tag = 'scoped memory for tpu_custom_call.1']
    #allocation14 [shape = 'u8[4096]{0}', space=vmem, size = 0x1000, scoped, tag = 'output window, operand 2, single buffered']
    #allocation15 [shape = 'u8[512]{0}', space=vmem, size = 0x400, scoped, tag = 'output window, operand 3, single buffered']
    #allocation16 [shape = 's32[1]{0}', space=sflag, size = 0x4, scoped, tag = 'scoped memory for tpu_custom_call.1']
    %15 = vsyncpa [#allocation4], 0
    %16 = vsyncpa [#allocation7], 0
    %17 = vsyncpa [#allocation10], 0
    %18 = vsyncpa [#allocation5], 0
    %19 = vsyncpa [#allocation13], 0
    %20 = vsyncpa [#allocation16], 0
    // Predicated region
    $region2: #{tpu_custom_call.1} parent=1 // pred_check
      _
    $region3: #{tpu_custom_call.1} parent=1 // pred_check_branch
      %22 = sbr.rel (0) target = $region5
    $region4: #{tpu_custom_call.1} parent=1 // pred_region
      _
    $region5: #{tpu_custom_call.1} parent=1 // pred_fallthru
      _
    // Predicated region
    $region6: #{tpu_custom_call.1} parent=1 // pred_check
      _
    $region7: #{tpu_custom_call.1} parent=1 // pred_check_branch
      %24 = sbr.rel (0) target = $region9
    $region8: #{tpu_custom_call.1} parent=1 // pred_region
      %s26 = ssub.s32 64, 64
      %27 = vsyncadd [#allocation4], %s26
      %s29 = sshll.u32 [#allocation3], 4
      %s30 = int_to_ptr.vmem [resolvable:$true] %s29
      %32 = dma.hbm_to_vmem [thread:$0]  %s1, 64, %s30, [#allocation4]
    $region9: #{tpu_custom_call.1} parent=1 // pred_fallthru
      _
    // Predicated region
    $region10: #{tpu_custom_call.1} parent=1 // pred_check
      _
    $region11: #{tpu_custom_call.1} parent=1 // pred_check_branch
      %34 = sbr.rel (0) target = $region13
    $region12: #{tpu_custom_call.1} parent=1 // pred_region
      %s36 = ssub.s32 64, 64
      %37 = vsyncadd [#allocation7], %s36
      %s39 = sshll.u32 [#allocation6], 4
      %s40 = int_to_ptr.vmem [resolvable:$true] %s39
      %42 = dma.hbm_to_vmem [thread:$0]  %s2, 64, %s40, [#allocation7]
    $region13: #{tpu_custom_call.1} parent=1 // pred_fallthru
      _
    // Predicated region
    $region14: #{tpu_custom_call.1} parent=1 // pred_check
      _
    $region15: #{tpu_custom_call.1} parent=1 // pred_check_branch
      %44 = sbr.rel (0) target = $region17
    $region16: #{tpu_custom_call.1} parent=1 // pred_region
      %s46 = ssub.s32 1024, 1024
      %47 = vsyncadd [#allocation7], %s46
      %s48 = sshll.u32 [#allocation8], 4
      %s49 = int_to_ptr.vmem [resolvable:$true] %s48
      %54 = dma.hbm_to_vmem [thread:$0]  %s3, 1024, %s49, [#allocation7], 64, 64, 4
    $region17: #{tpu_custom_call.1} parent=1 // pred_fallthru
      _
    // Predicated region
    $region18: #{tpu_custom_call.1} parent=1 // pred_check
      _
    $region19: #{tpu_custom_call.1} parent=1 // pred_check_branch
      %56 = sbr.rel (0) target = $region21
    $region20: #{tpu_custom_call.1} parent=1 // pred_region
      %s58 = ssub.s32 1024, 1024
      %59 = vsyncadd [#allocation10], %s58
      %s60 = sshll.u32 [#allocation9], 4
      %s61 = int_to_ptr.vmem [resolvable:$true] %s60
      %66 = dma.hbm_to_vmem [thread:$0]  %s4, 1024, %s61, [#allocation10], 64, 64, 4
    $region21: #{tpu_custom_call.1} parent=1 // pred_fallthru
      _
    // Predicated region
    $region22: #{tpu_custom_call.1} parent=1 // pred_check
      _
    $region23: #{tpu_custom_call.1} parent=1 // pred_check_branch
      %68 = sbr.rel (0) target = $region25
    $region24: #{tpu_custom_call.1} parent=1 // pred_region
      %69 = dma.done [#allocation4], 64
    $region25: #{tpu_custom_call.1} parent=1 // pred_fallthru
      _
    // Predicated region
    $region26: #{tpu_custom_call.1} parent=1 // pred_check
      _
    $region27: #{tpu_custom_call.1} parent=1 // pred_check_branch
      %71 = sbr.rel (0) target = $region29
    $region28: #{tpu_custom_call.1} parent=1 // pred_region
      %72 = dma.done [#allocation7], 64
    $region29: #{tpu_custom_call.1} parent=1 // pred_fallthru
      _
    // Predicated region
    $region30: #{tpu_custom_call.1} parent=1 // pred_check
      _
    $region31: #{tpu_custom_call.1} parent=1 // pred_check_branch
      %74 = sbr.rel (0) target = $region33
    $region32: #{tpu_custom_call.1} parent=1 // pred_region
      %75 = dma.done [#allocation7], 1024
    $region33: #{tpu_custom_call.1} parent=1 // pred_fallthru
      _
    // Predicated region
    $region34: #{tpu_custom_call.1} parent=1 // pred_check
      _
    $region35: #{tpu_custom_call.1} parent=1 // pred_check_branch
      %77 = sbr.rel (0) target = $region37
    $region36: #{tpu_custom_call.1} parent=1 // pred_region
      %78 = dma.done [#allocation10], 1024
    $region37: #{tpu_custom_call.1} parent=1 // pred_fallthru
      _
    %v80 = vld [vmem:[#allocation3] sm:$0xf]
    %v81 = vld [vmem:[#allocation8] sm:$0xf]
    %v82 = vld [vmem:[#allocation8 + $0x4] sm:$0xf]
    %v83 = vld [vmem:[#allocation8 + $0x8] sm:$0xf]
    %v84 = vld [vmem:[#allocation8 + $0xc] sm:$0xf]
    %v85 = vld [vmem:[#allocation8 + $0x10] sm:$0xf]
    %v86 = vld [vmem:[#allocation8 + $0x14] sm:$0xf]
    %v87 = vld [vmem:[#allocation8 + $0x18] sm:$0xf]
    %v88 = vld [vmem:[#allocation8 + $0x1c] sm:$0xf]
    %v89 = vld [vmem:[#allocation8 + $0x20] sm:$0xf]
    %v90 = vld [vmem:[#allocation8 + $0x24] sm:$0xf]
    %v91 = vld [vmem:[#allocation8 + $0x28] sm:$0xf]
    %v92 = vld [vmem:[#allocation8 + $0x2c] sm:$0xf]
    %v93 = vld [vmem:[#allocation8 + $0x30] sm:$0xf]
    %v94 = vld [vmem:[#allocation8 + $0x34] sm:$0xf]
    %v95 = vld [vmem:[#allocation8 + $0x38] sm:$0xf]
    %v96 = vld [vmem:[#allocation8 + $0x3c] sm:$0xf]
    %v113 = vunpack.c.l.b16 %v81
    %v114 = vunpack.c.l.b16 %v82
    %v115 = vunpack.c.l.b16 %v83
    %v116 = vunpack.c.l.b16 %v84
    %v117 = vunpack.c.l.b16 %v85
    %v118 = vunpack.c.l.b16 %v86
    %v119 = vunpack.c.l.b16 %v87
    %v120 = vunpack.c.l.b16 %v88
    %v121 = vunpack.c.l.b16 %v89
    %v122 = vunpack.c.l.b16 %v90
    %v123 = vunpack.c.l.b16 %v91
    %v124 = vunpack.c.l.b16 %v92
    %v125 = vunpack.c.l.b16 %v93
    %v126 = vunpack.c.l.b16 %v94
    %v127 = vunpack.c.l.b16 %v95
    %v128 = vunpack.c.l.b16 %v96
    %v129 = vpack.c.b16 %v114, %v113
    %v130 = vpack.c.b16 %v116, %v115
    %v131 = vpack.c.b16 %v118, %v117
    %v132 = vpack.c.b16 %v120, %v119
    %v133 = vpack.c.b16 %v122, %v121
    %v134 = vpack.c.b16 %v124, %v123
    %v135 = vpack.c.b16 %v126, %v125
    %v136 = vpack.c.b16 %v128, %v127
    %145 = vmatprep.subr.bf16.mxu0 0
    %146 = vmatpush1.bf16.msra.mxu0 %v136
    %147 = vmatprep.subr.bf16.mxu0 0
    %148 = vmatpush1.bf16.msra.mxu0 %v135
    %149 = vmatprep.subr.bf16.mxu0 0
    %150 = vmatpush1.bf16.msra.mxu0 %v134
    %151 = vmatprep.subr.bf16.mxu0 0
    %152 = vmatpush1.bf16.msra.mxu0 %v133
    %153 = vmatprep.subr.bf16.mxu0 0
    %154 = vmatpush1.bf16.msra.mxu0 %v132
    %155 = vmatprep.subr.bf16.mxu0 0
    %156 = vmatpush1.bf16.msra.mxu0 %v131
    %157 = vmatprep.subr.bf16.mxu0 0
    %158 = vmatpush1.bf16.msra.mxu0 %v130
    %159 = vmatprep.subr.bf16.mxu0 0
    %160 = vmatpush1.bf16.msra.mxu0 %v129
    %161 = vmatprep.subr.bf16.mxu0 0
    %162 = vmatpush2.bf16.msra.mxu0 0
    %163 = vmatprep.subr.bf16.mxu0 0
    %164 = vmatpush2.bf16.msra.mxu0 0
    %165 = vmatprep.subr.bf16.mxu0 0
    %166 = vmatpush2.bf16.msra.mxu0 0
    %167 = vmatprep.subr.bf16.mxu0 0
    %168 = vmatpush2.bf16.msra.mxu0 0
    %169 = vmatprep.subr.bf16.mxu0 0
    %170 = vmatpush2.bf16.msra.mxu0 0
    %171 = vmatprep.subr.bf16.mxu0 0
    %172 = vmatpush2.bf16.msra.mxu0 0
    %173 = vmatprep.subr.bf16.mxu0 0
    %174 = vmatpush2.bf16.msra.mxu0 0
    %175 = vmatprep.subr.bf16.mxu0 0
    %176 = vmatpush2.bf16.msra.mxu0 0
    %177 = vmatprep.mubr.bf16.mxu0 0
    %178 = vmatmul.mubr.bf16.gmra.mxu0 %v80
    %v179 = vpop.f32.mrf.mxu0
    %v180 = vadd.f32 0.0, %v179
    %v181 = vpop.f32.mrf.mxu0
    %v182 = vpop.f32.mrf.mxu0
    %v183 = vpop.f32.mrf.mxu0
    %184 = vdwg.mxu0
    %v185 = vld [vmem:[#allocation6] sm:$0xf]
    %v186 = vld [vmem:[#allocation9] sm:$0xf]
    %v187 = vld [vmem:[#allocation9 + $0x4] sm:$0xf]
    %v188 = vld [vmem:[#allocation9 + $0x8] sm:$0xf]
    %v189 = vld [vmem:[#allocation9 + $0xc] sm:$0xf]
    %v190 = vld [vmem:[#allocation9 + $0x10] sm:$0xf]
    %v191 = vld [vmem:[#allocation9 + $0x14] sm:$0xf]
    %v192 = vld [vmem:[#allocation9 + $0x18] sm:$0xf]
    %v193 = vld [vmem:[#allocation9 + $0x1c] sm:$0xf]
    %v194 = vld [vmem:[#allocation9 + $0x20] sm:$0xf]
    %v195 = vld [vmem:[#allocation9 + $0x24] sm:$0xf]
    %v196 = vld [vmem:[#allocation9 + $0x28] sm:$0xf]
    %v197 = vld [vmem:[#allocation9 + $0x2c] sm:$0xf]
    %v198 = vld [vmem:[#allocation9 + $0x30] sm:$0xf]
    %v199 = vld [vmem:[#allocation9 + $0x34] sm:$0xf]
    %v200 = vld [vmem:[#allocation9 + $0x38] sm:$0xf]
    %v201 = vld [vmem:[#allocation9 + $0x3c] sm:$0xf]
    %v218 = vunpack.c.l.b16 %v186
    %v219 = vunpack.c.l.b16 %v187
    %v220 = vunpack.c.l.b16 %v188
    %v221 = vunpack.c.l.b16 %v189
    %v222 = vunpack.c.l.b16 %v190
    %v223 = vunpack.c.l.b16 %v191
    %v224 = vunpack.c.l.b16 %v192
    %v225 = vunpack.c.l.b16 %v193
    %v226 = vunpack.c.l.b16 %v194
    %v227 = vunpack.c.l.b16 %v195
    %v228 = vunpack.c.l.b16 %v196
    %v229 = vunpack.c.l.b16 %v197
    %v230 = vunpack.c.l.b16 %v198
    %v231 = vunpack.c.l.b16 %v199
    %v232 = vunpack.c.l.b16 %v200
    %v233 = vunpack.c.l.b16 %v201
    %v234 = vpack.c.b16 %v219, %v218
    %v235 = vpack.c.b16 %v221, %v220
    %v236 = vpack.c.b16 %v223, %v222
    %v237 = vpack.c.b16 %v225, %v224
    %v238 = vpack.c.b16 %v227, %v226
    %v239 = vpack.c.b16 %v229, %v228
    %v240 = vpack.c.b16 %v231, %v230
    %v241 = vpack.c.b16 %v233, %v232
    %250 = vmatprep.subr.bf16.mxu0 0
    %251 = vmatpush1.bf16.msra.mxu0 %v241
    %252 = vmatprep.subr.bf16.mxu0 0
    %253 = vmatpush1.bf16.msra.mxu0 %v240
    %254 = vmatprep.subr.bf16.mxu0 0
    %255 = vmatpush1.bf16.msra.mxu0 %v239
    %256 = vmatprep.subr.bf16.mxu0 0
    %257 = vmatpush1.bf16.msra.mxu0 %v238
    %258 = vmatprep.subr.bf16.mxu0 0
    %259 = vmatpush1.bf16.msra.mxu0 %v237
    %260 = vmatprep.subr.bf16.mxu0 0
    %261 = vmatpush1.bf16.msra.mxu0 %v236
    %262 = vmatprep.subr.bf16.mxu0 0
    %263 = vmatpush1.bf16.msra.mxu0 %v235
    %264 = vmatprep.subr.bf16.mxu0 0
    %265 = vmatpush1.bf16.msra.mxu0 %v234
    %266 = vmatprep.subr.bf16.mxu0 0
    %267 = vmatpush2.bf16.msra.mxu0 0
    %268 = vmatprep.subr.bf16.mxu0 0
    %269 = vmatpush2.bf16.msra.mxu0 0
    %270 = vmatprep.subr.bf16.mxu0 0
    %271 = vmatpush2.bf16.msra.mxu0 0
    %272 = vmatprep.subr.bf16.mxu0 0
    %273 = vmatpush2.bf16.msra.mxu0 0
    %274 = vmatprep.subr.bf16.mxu0 0
    %275 = vmatpush2.bf16.msra.mxu0 0
    %276 = vmatprep.subr.bf16.mxu0 0
    %277 = vmatpush2.bf16.msra.mxu0 0
    %278 = vmatprep.subr.bf16.mxu0 0
    %279 = vmatpush2.bf16.msra.mxu0 0
    %280 = vmatprep.subr.bf16.mxu0 0
    %281 = vmatpush2.bf16.msra.mxu0 0
    %282 = vmatprep.mubr.bf16.mxu0 0
    %283 = vmatmul.mubr.bf16.gmra.mxu0 %v185
    %v284 = vpop.f32.mrf.mxu0
    %v285 = vadd.f32 0.0, %v284
    %v286 = vpop.f32.mrf.mxu0
    %v287 = vpop.f32.mrf.mxu0
    %v288 = vpop.f32.mrf.mxu0
    %289 = vdwg.mxu0
    %v290 = vmul.f32 %v180, %v180
    %291 = vadd.xlane.f32.xlu0 %v290
    %v292 = vpop.xlane.xlu0 %291
    %v293 = vmax.f32 %v292, 1e-24
    %v294 = vrsqrt.pop %v293
    %v295 = vmul.f32 %v180, %v294
    %v296 = vmul.f32 %v285, %v285
    %297 = vadd.xlane.f32.xlu0 %v296
    %v298 = vpop.xlane.xlu0 %297
    %v299 = vmax.f32 %v298, 1e-24
    %v300 = vrsqrt.pop %v299
    %v301 = vmul.f32 %v285, %v300
    %302 = vst [vmem:[#allocation11] sm:$0xff] %v295
    %303 = vst [vmem:[#allocation12] sm:$0xff] %v301
    %s304 = sld [smem:[#allocation2]]
    %v305 = vstv %s304
    %v306 = vrcp.pop %v305
    %s307 = vtos %v306
    %v308 = vpack.c.bf16 %v295, %v295
    %v309 = vpack.c.bf16 %v301, %v301
    %310 = vmatprep.subr.bf16.mxu0 0
    %311 = vmatpush1.bf16.xpose.msra.mxu0 0
    %312 = vmatprep.subr.bf16.mxu0 0
    %313 = vmatpush1.bf16.xpose.msra.mxu0 0
    %314 = vmatprep.subr.bf16.mxu0 0
    %315 = vmatpush1.bf16.xpose.msra.mxu0 0
    %316 = vmatprep.subr.bf16.mxu0 0
    %317 = vmatpush1.bf16.xpose.msra.mxu0 0
    %318 = vmatprep.subr.bf16.mxu0 0
    %319 = vmatpush1.bf16.xpose.msra.mxu0 0
    %320 = vmatprep.subr.bf16.mxu0 0
    %321 = vmatpush1.bf16.xpose.msra.mxu0 0
    %322 = vmatprep.subr.bf16.mxu0 0
    %323 = vmatpush1.bf16.xpose.msra.mxu0 0
    %324 = vmatprep.subr.bf16.mxu0 0
    %325 = vmatpush1.bf16.xpose.msra.mxu0 %v309
    %326 = vmatprep.subr.bf16.mxu0 0
    %327 = vmatpush2.bf16.xpose.msra.mxu0 0
    %328 = vmatprep.subr.bf16.mxu0 0
    %329 = vmatpush2.bf16.xpose.msra.mxu0 0
    %330 = vmatprep.subr.bf16.mxu0 0
    %331 = vmatpush2.bf16.xpose.msra.mxu0 0
    %332 = vmatprep.subr.bf16.mxu0 0
    %333 = vmatpush2.bf16.xpose.msra.mxu0 0
    %334 = vmatprep.subr.bf16.mxu0 0
    %335 = vmatpush2.bf16.xpose.msra.mxu0 0
    %336 = vmatprep.subr.bf16.mxu0 0
    %337 = vmatpush2.bf16.xpose.msra.mxu0 0
    %338 = vmatprep.subr.bf16.mxu0 0
    %339 = vmatpush2.bf16.xpose.msra.mxu0 0
    %340 = vmatprep.subr.bf16.mxu0 0
    %341 = vmatpush2.bf16.xpose.msra.mxu0 0
    %342 = vmatprep.mubr.bf16.mxu0 0
    %343 = vmatmul.mubr.bf16.gmra.mxu0 %v308
    %v344 = vpop.f32.mrf.mxu0
    %v345 = vadd.f32 0.0, %v344
    %v346 = vpop.f32.mrf.mxu0
    %v347 = vpop.f32.mrf.mxu0
    %v348 = vpop.f32.mrf.mxu0
    %349 = vdwg.mxu0
    %v350 = vstv %s307
    %v351 = vmul.f32 %v345, %v350
    %vm352 = vcmask 64512
    %353 = vst.msk [vmem:[#allocation14] sm:$0xff] %vm352, %v351
    %v354 = vlaneseq
    %v355 = vshrl.u32 %v354, 7
    %v356 = vlaneseq
    %v357 = vand.u32 %v356, 127
    %vm358 = vcmp.eq.s32.totalorder %v355, %v357
    %v359 = vsel %vm358, %v351, 0.0
    %v360 = vsel %vm352, %v359, 0.0
    %361 = vadd.xlane.f32.xlu0 %v360
    %v362 = vpop.xlane.xlu0 %361
    %v363 = vrot.slane %v362, 4
    %v364 = vadd.f32 %v362, %v363
    %v365 = vrot.slane %v364, 2
    %v366 = vadd.f32 %v364, %v365
    %v367 = vrot.slane %v366, 1
    %v368 = vadd.f32 %v366, %v367
    %s369 = vtos %v368
    %v370 = vrcp.pop 8.0
    %s371 = vtos %v370
    %s372 = smul.f32 %s369, %s371
    %v373 = vsel %vm352, %v351, -inf
    %374 = vmax.xlane.f32.xlu0 %v373
    %v375 = vpop.xlane.xlu0 %374
    %v376 = vsub.f32 %v351, %v375
    %v377 = vmul.f32 %v376, 1.442695
    %v378 = vpow.pop %v377
    %v379 = vsel %vm352, %v378, 0.0
    %380 = vadd.xlane.f32.xlu0 %v379
    %v381 = vpop.xlane.xlu0 %380
    %v382 = vlog2.pop %v381
    %v383 = vmul.f32 %v382, 0.6931472
    %v384 = vadd.f32 %v383, %v375
    %vm385 = vcmask 7168
    %v386 = vsel %vm385, %v384, 0.0
    %387 = vadd.xlane.f32.xlu0 %v386
    %v388 = vpop.xlane.xlu0 %387
    %v389 = vrot.slane %v388, 4
    %v390 = vadd.f32 %v388, %v389
    %v391 = vrot.slane %v390, 2
    %v392 = vadd.f32 %v390, %v391
    %v393 = vrot.slane %v392, 1
    %v394 = vadd.f32 %v392, %v393
    %s395 = vtos %v394
    %v396 = vrcp.pop 8.0
    %s397 = vtos %v396
    %s398 = smul.f32 %s395, %s397
    %s399 = ssub.f32 %s398, %s372
    %v400 = vrot.slane %v373, 4
    %v401 = vmax.f32 %v373, %v400
    %v402 = vrot.slane %v401, 2
    %v403 = vmax.f32 %v401, %v402
    %v404 = vrot.slane %v403, 1
    %v405 = vmax.f32 %v403, %v404
    %v406 = vsub.f32 %v351, %v405
    %v407 = vmul.f32 %v406, 1.442695
    %v408 = vpow.pop %v407
    %v409 = vsel %vm352, %v408, 0.0
    %v410 = vrot.slane %v409, 4
    %v411 = vadd.f32 %v409, %v410
    %v412 = vrot.slane %v411, 2
    %v413 = vadd.f32 %v411, %v412
    %v414 = vrot.slane %v413, 1
    %v415 = vadd.f32 %v413, %v414
    %v416 = vlog2.pop %v415
    %v417 = vmul.f32 %v416, 0.6931472
    %v418 = vadd.f32 %v417, %v405
    %vm419 = vcmask 57344
    %v420 = vsel %vm419, %v418, 0.0
    %421 = vadd.xlane.f32.xlu0 %v420
    %v422 = vpop.xlane.xlu0 %421
    %v423 = vrot.slane %v422, 4
    %v424 = vadd.f32 %v422, %v423
    %v425 = vrot.slane %v424, 2
    %v426 = vadd.f32 %v424, %v425
    %v427 = vrot.slane %v426, 1
    %v428 = vadd.f32 %v426, %v427
    %s429 = vtos %v428
    %v430 = vrcp.pop 8.0
    %s431 = vtos %v430
    %s432 = smul.f32 %s429, %s431
    %s433 = ssub.f32 %s432, %s372
    %s434 = sadd.f32 %s399, %s433
    %s435 = smul.f32 %s434, 0.5
    %vm436 = vcmp.eq.s32.totalorder %v357, 0
    %vm437 = vcmp.eq.s32.totalorder %v357, 1
    %vm438 = vcmp.eq.s32.totalorder %v357, 2
    %v439 = vstv %s433
    %v440 = vsel %vm438, %v439, 0.0
    %v441 = vstv %s399
    %v442 = vsel %vm437, %v441, %v440
    %v443 = vstv %s435
    %v444 = vsel %vm436, %v443, %v442
    %445 = vst [vmem:[#allocation15] sm:$0x1] %v444
    // Predicated region
    $region38: #{tpu_custom_call.1} parent=1 // pred_check
      _
    $region39: #{tpu_custom_call.1} parent=1 // pred_check_branch
      %447 = sbr.rel (0) target = $region41
    $region40: #{tpu_custom_call.1} parent=1 // pred_region
      %s449 = ssub.s32 128, 128
      %450 = vsyncadd [#allocation5], %s449
      %s452 = sshll.u32 [#allocation11], 4
      %s453 = int_to_ptr.vmem [resolvable:$true] %s452
      %455 = dma.vmem_to_hbm [thread:$0]  %s453, 128, %s5, [#allocation5]
    $region41: #{tpu_custom_call.1} parent=1 // pred_fallthru
      _
    // Predicated region
    $region42: #{tpu_custom_call.1} parent=1 // pred_check
      _
    $region43: #{tpu_custom_call.1} parent=1 // pred_check_branch
      %457 = sbr.rel (0) target = $region45
    $region44: #{tpu_custom_call.1} parent=1 // pred_region
      %s459 = ssub.s32 128, 128
      %460 = vsyncadd [#allocation13], %s459
      %s462 = sshll.u32 [#allocation12], 4
      %s463 = int_to_ptr.vmem [resolvable:$true] %s462
      %465 = dma.vmem_to_hbm [thread:$0]  %s463, 128, %s6, [#allocation13]
    $region45: #{tpu_custom_call.1} parent=1 // pred_fallthru
      _
    // Predicated region
    $region46: #{tpu_custom_call.1} parent=1 // pred_check
      _
    $region47: #{tpu_custom_call.1} parent=1 // pred_check_branch
      %467 = sbr.rel (0) target = $region49
    $region48: #{tpu_custom_call.1} parent=1 // pred_region
      %s469 = ssub.s32 128, 128
      %470 = vsyncadd [#allocation13], %s469
      %s472 = sshll.u32 [#allocation14], 4
      %s473 = int_to_ptr.vmem [resolvable:$true] %s472
      %475 = dma.vmem_to_hbm [thread:$0]  %s473, 128, %s7, [#allocation13]
    $region49: #{tpu_custom_call.1} parent=1 // pred_fallthru
      _
    // Predicated region
    $region50: #{tpu_custom_call.1} parent=1 // pred_check
      _
    $region51: #{tpu_custom_call.1} parent=1 // pred_check_branch
      %477 = sbr.rel (0) target = $region53
    $region52: #{tpu_custom_call.1} parent=1 // pred_region
      %s479 = ssub.s32 16, 16
      %480 = vsyncadd [#allocation16], %s479
      %s482 = sshll.u32 [#allocation15], 4
      %s483 = int_to_ptr.vmem [resolvable:$true] %s482
      %485 = dma.vmem_to_hbm [thread:$0]  %s483, 16, %s8, [#allocation16]
    $region53: #{tpu_custom_call.1} parent=1 // pred_fallthru
      _
    // Predicated region
    $region54: #{tpu_custom_call.1} parent=1 // pred_check
      _
    $region55: #{tpu_custom_call.1} parent=1 // pred_check_branch
      %487 = sbr.rel (0) target = $region57
    $region56: #{tpu_custom_call.1} parent=1 // pred_region
      %488 = dma.done [#allocation5], 128
    $region57: #{tpu_custom_call.1} parent=1 // pred_fallthru
      _
    // Predicated region
    $region58: #{tpu_custom_call.1} parent=1 // pred_check
      _
    $region59: #{tpu_custom_call.1} parent=1 // pred_check_branch
      %490 = sbr.rel (0) target = $region61
    $region60: #{tpu_custom_call.1} parent=1 // pred_region
      %491 = dma.done [#allocation13], 128
    $region61: #{tpu_custom_call.1} parent=1 // pred_fallthru
      _
    // Predicated region
    $region62: #{tpu_custom_call.1} parent=1 // pred_check
      _
    $region63: #{tpu_custom_call.1} parent=1 // pred_check_branch
      %493 = sbr.rel (0) target = $region65
    $region64: #{tpu_custom_call.1} parent=1 // pred_region
      %494 = dma.done [#allocation13], 128
    $region65: #{tpu_custom_call.1} parent=1 // pred_fallthru
      _
    // Predicated region
    $region66: #{tpu_custom_call.1} parent=1 // pred_check
      _
    $region67: #{tpu_custom_call.1} parent=1 // pred_check_branch
      %496 = sbr.rel (0) target = $region69
    $region68: #{tpu_custom_call.1} parent=1 // pred_region
      %497 = dma.done [#allocation16], 16
    $region69: #{tpu_custom_call.1} parent=1 // pred_fallthru
      _
    %498 = vsyncpa [#allocation4], 1
    %499 = vsyncpa [#allocation7], 1
    %500 = vsyncpa [#allocation10], 1
    %501 = vsyncpa [#allocation5], 1
    %502 = vsyncpa [#allocation13], 1
    %503 = vsyncpa [#allocation16], 1

</llo_original>
